<compile_context>
chip_gen: v7x
topology: tpu7x:2x2x1
jax: 0.10.0
libtpu: 0.0.40
codegen_flags: <defaults>
</compile_context>

<pallas_src>
import functools

import jax
import jax.numpy as jnp
import numpy as np
from jax import lax
from jax.experimental import pallas as pl
from jax.experimental.pallas import tpu as pltpu


# ----------------------------- Pallas kernel --------------------------------
def actor_kernel(hot_ref, tflat_ref, state_ref,
                 w1s_ref, w1a_ref, b1_ref, w2_ref, b2_ref, w3_ref, b3_ref,
                 prob_ref, *, batch, na):
    _, DA = tflat_ref.shape

    # ---- Embedding + Conv1d + bias folded into ONE multi-hot matmul ---------
    # hot_ref: (batch*na, K*NACT + 1) bf16, last column selects the bias row.
    conv = jnp.dot(hot_ref[...], tflat_ref[...],
                   preferred_element_type=jnp.float32)          # (B*NA, DA) f32
    conv = jnp.maximum(conv, 0.0)                               # ReLU
    # sum-pool over the past-action axis -> (batch, DA); na is a multiple of 8
    # so this reshape is sublane-tile aligned (no relayout).
    action_embed = jnp.sum(conv.reshape(batch, na, DA), axis=1)

    # ---- MLP: split first matmul instead of cat(state, action_embed) --------
    h = (jnp.dot(state_ref[...], w1s_ref[...], preferred_element_type=jnp.float32)
         + jnp.dot(action_embed.astype(jnp.bfloat16), w1a_ref[...],
                   preferred_element_type=jnp.float32)
         + b1_ref[...])
    h = h * jax.nn.sigmoid(h)                                   # SiLU
    h = jnp.dot(h.astype(jnp.bfloat16), w2_ref[...],
                preferred_element_type=jnp.float32) + b2_ref[...]
    h = h * jax.nn.sigmoid(h)                                   # SiLU
    logits = jnp.dot(h.astype(jnp.bfloat16), w3_ref[...],
                     preferred_element_type=jnp.float32) + b3_ref[...]
    # Padded action columns carry logits of -1e30 -> exp underflows to exactly
    # 0, so softmax over the padded 128 lanes equals softmax over NACT.

    # ---- softmax over actions (sample=False path of Actor.forward) ----------
    m = jnp.max(logits, axis=-1, keepdims=True)
    e = jnp.exp(logits - m)
    s = jnp.sum(e, axis=-1, keepdims=True)
    prob_ref[...] = e * pl.reciprocal(s, approx=True)           # EUP vrcp


# --------------------------- host-side preparation ---------------------------
def _round_up(x, m):
    return ((x + m - 1) // m) * m


def prepare_actor_params(raw):
    """Fold conv weights+bias into the embedding table; pad the action dim to
    128 lanes; cast MXU operands to bf16 (biases stay f32)."""
    emb = raw["emb"]                         # (NACT, DA) f32
    cw = raw["cw"]                           # torch Conv1d weight (O, C, K)
    K = cw.shape[2]
    NACT, DA = emb.shape
    cw_t = jnp.transpose(cw, (2, 1, 0))      # (K, C, O)
    # T_k = emb @ cw_t[k] -> stacked (K*NACT, DA); row k*NACT + a = T_k[a].
    tflat = jnp.einsum("nc,kco->kno", emb, cw_t).reshape(K * NACT, DA)
    # Extra row = conv bias, selected by the "valid position" column of the
    # multi-hot matrix (so padded rows get no bias and sum to zero).
    tflat_ext = jnp.concatenate([tflat, raw["cb"].reshape(1, DA)], axis=0)

    d_state = raw["w1"].shape[0] - DA
    nact_out = raw["w3"].shape[1]
    nact_p = _round_up(max(nact_out, 128), 128)
    w3p = jnp.zeros((raw["w3"].shape[0], nact_p), jnp.float32)
    w3p = w3p.at[:, :nact_out].set(raw["w3"])
    b3p = jnp.full((1, nact_p), -1e30, jnp.float32)
    b3p = b3p.at[0, :nact_out].set(raw["b3"])

    return dict(
        tflat=tflat_ext.astype(jnp.bfloat16),          # (K*NACT+1, DA)
        w1s=raw["w1"][:d_state].astype(jnp.bfloat16),  # (D0, H1) multiplies state
        w1a=raw["w1"][d_state:].astype(jnp.bfloat16),  # (DA, H1) multiplies action_embed
        b1=raw["b1"].reshape(1, -1),                   # f32
        w2=raw["w2"].astype(jnp.bfloat16),
        b2=raw["b2"].reshape(1, -1),
        w3=w3p.astype(jnp.bfloat16),                   # (H2, nact_p)
        b3=b3p,                                        # f32, padded with -1e30
        num_actions=int(nact_out), taps=int(K), nact_p=int(nact_p),
    )


def _build_multihot(past_actions, Bp, NAp, K, NACT):
    """(Bp*NAp, K*NACT + 1) bf16 multi-hot: column k*NACT + a is hot iff the
    k-th conv tap at this position reads past_action value a; the last column
    is 1 for valid (b < B, n < NA) positions (selects the conv-bias row)."""
    B, NA = past_actions.shape
    pad = K // 2
    pa = past_actions.astype(jnp.int32)
    pa = jnp.pad(pa, ((0, Bp - B), (0, NAp - NA)), constant_values=-1)
    padded = jnp.pad(pa, ((0, 0), (pad, pad)), constant_values=-1)  # (Bp, NAp+K-1)
    cols = []
    for k in range(K):
        win = lax.slice_in_dim(padded, k, k + NAp, axis=1)          # (Bp, NAp)
        cols.append(jax.nn.one_hot(win, NACT, dtype=jnp.float32))   # -1 -> all-zero
    valid = (jnp.arange(Bp)[:, None] < B) & (jnp.arange(NAp)[None, :] < NA)
    cols.append(valid.astype(jnp.float32)[..., None])               # bias column
    hot = jnp.concatenate(cols, axis=-1)                            # (Bp, NAp, K*NACT+1)
    hot = jnp.where(valid[:, :, None], hot, 0.0)                    # zero padded rows
    return hot.reshape(Bp * NAp, K * NACT + 1).astype(jnp.bfloat16)


def _pick_batch_block(B, max_rows=256):
    """Block rows: multiple of 8, capped at max_rows, and chosen so large
    batches give >= 2 grid steps (v7x megacore sharding).  Raise max_rows
    (e.g. 1024) on single-core, big-VMEM chips such as v6e."""
    if B <= 8:
        return 8
    return min(max_rows, _round_up(-(-B // 2), 8))


# ------------------------------- wrapper -------------------------------------
def actor_forward(params, state, past_actions, *, max_rows=256):
    B, D0 = state.shape
    NA = past_actions.shape[1]
    KN1, DA = params["tflat"].shape
    NACT = params["num_actions"]
    K = params["taps"]
    NACT_P = params["nact_p"]
    H1 = params["w1s"].shape[1]
    H2 = params["w2"].shape[1]

    BB = _pick_batch_block(B, max_rows)
    Bp = _round_up(B, BB)            # pad batch -> stable grid/block shapes
    NAp = _round_up(NA, 8)           # sublane-aligned past-action axis
    grid = (Bp // BB,)

    hot = _build_multihot(past_actions, Bp, NAp, K, NACT)     # (Bp*NAp, KN1) bf16
    state_p = jnp.zeros((Bp, D0), jnp.bfloat16).at[:B].set(state.astype(jnp.bfloat16))

    kernel = functools.partial(actor_kernel, batch=BB, na=NAp)

    def fixed(shape):
        nd = len(shape)
        return pl.BlockSpec(shape, lambda *_: (0,) * nd)      # weights: constant block

    in_specs = [
        pl.BlockSpec((BB * NAp, KN1), lambda i: (i, 0)),      # multi-hot (tiled over B)
        fixed((KN1, DA)),                                     # folded emb*conv(+bias) table
        pl.BlockSpec((BB, D0), lambda i: (i, 0)),             # state (tiled over B)
        fixed((D0, H1)), fixed((DA, H1)), fixed((1, H1)),     # w1_state, w1_act, b1
        fixed((H1, H2)), fixed((1, H2)),                      # w2, b2
        fixed((H2, NACT_P)), fixed((1, NACT_P)),              # w3, b3 (128-lane padded)
    ]
    out_specs = pl.BlockSpec((BB, NACT_P), lambda i: (i, 0))  # lane-dense output

    prob = pl.pallas_call(
        kernel,
        out_shape=jax.ShapeDtypeStruct((Bp, NACT_P), jnp.float32),
        grid=grid,
        in_specs=in_specs,
        out_specs=out_specs,
        compiler_params=pltpu.CompilerParams(dimension_semantics=("parallel",)),
    )(hot, params["tflat"], state_p,
      params["w1s"], params["w1a"], params["b1"],
      params["w2"], params["b2"], params["w3"], params["b3"])
    return prob[:B, :NACT]
# TODO(synk): the past_actions=None branch (null_action_embed) and the
# sample=True gumbel-sampling branch are not implemented (torch RNG semantics
# can't be reproduced bit-exactly).


# --------------------------- pure-JAX reference ------------------------------
def actor_reference(raw, state, past_actions):
    emb = raw["emb"][past_actions]                            # (B, NA, DA)
    x = jnp.transpose(emb, (0, 2, 1))                         # (B, DA, NA) NCW
    y = lax.conv_general_dilated(x, raw["cw"], window_strides=(1,), padding="SAME",
                                 dimension_numbers=("NCH", "OIH", "NCH"))
    y = y + raw["cb"].reshape(1, -1, 1)
    y = jnp.maximum(y, 0.0)
    action_embed = jnp.sum(y, axis=-1)                        # (B, DA)

    h = jnp.concatenate([state, action_embed], axis=-1)
    h = jax.nn.silu(h @ raw["w1"] + raw["b1"])
    h = jax.nn.silu(h @ raw["w2"] + raw["b2"])
    logits = h @ raw["w3"] + raw["b3"]
    return jax.nn.softmax(logits, axis=-1)


# --------------------------------- main ---------------------------------------
if __name__ == "__main__":
    # Small shapes consistent with the module:
    #   num_actions=8, dims=(32, 32, 16), dim_action_embed=4, kernel=3
    B, NA = 2, 8                 # batch, number of past actions
    NUM_ACTIONS = 8
    DA = 4                       # dim_action_embed
    K = 3                        # past_action_conv_kernel
    D0, H1, H2 = 32, 32, 16      # dims (first_state_dim, hidden dims)
    D_IN = D0 + DA               # first MLP input after concat

    key = jax.random.PRNGKey(0)
    ks = jax.random.split(key, 12)

    emb_tbl = jax.random.normal(ks[0], (NUM_ACTIONS, DA), jnp.float32) * 0.5
    cw = jax.random.normal(ks[1], (DA, DA, K), jnp.float32) * 0.3   # torch Conv1d (O, C, K)
    cb = jax.random.normal(ks[2], (DA,), jnp.float32) * 0.1
    w1 = jax.random.normal(ks[3], (D_IN, H1), jnp.float32) * (1.0 / np.sqrt(D_IN))
    b1 = jax.random.normal(ks[4], (H1,), jnp.float32) * 0.05
    w2 = jax.random.normal(ks[5], (H1, H2), jnp.float32) * (1.0 / np.sqrt(H1))
    b2 = jax.random.normal(ks[6], (H2,), jnp.float32) * 0.05
    w3 = jax.random.normal(ks[7], (H2, NUM_ACTIONS), jnp.float32) * (1.0 / np.sqrt(H2))
    b3 = jax.random.normal(ks[8], (NUM_ACTIONS,), jnp.float32) * 0.05

    raw = dict(emb=emb_tbl, cw=cw, cb=cb,
               w1=w1, b1=b1, w2=w2, b2=b2, w3=w3, b3=b3)
    params = prepare_actor_params(raw)

    state = jax.random.normal(ks[9], (B, D0), jnp.float32)
    past_actions = jax.random.randint(ks[10], (B, NA), 0, NUM_ACTIONS, jnp.int32)

    prob = actor_forward(params, state, past_actions)
    jax.block_until_ready(prob)

    ref = actor_reference(raw, state, past_actions)
    # bf16 MXU operands (per perf review) -> relaxed tolerance vs the f32 reference.
    np.testing.assert_allclose(np.asarray(prob), np.asarray(ref), rtol=3e-2, atol=3e-2)
    assert prob.shape == (B, NUM_ACTIONS)
    # Padded action lanes contribute exactly 0 probability; approx reciprocal is
    # accurate to well below 1e-2.
    np.testing.assert_allclose(np.asarray(prob).sum(-1), np.ones(B), rtol=1e-2, atol=1e-2)

    print("KERNEL_OK")
</pallas_src>

<mosaic_0001>
module attributes {stable_mosaic.version = 11 : i64} {
  func.func @actor_kernel(%arg0: i32, %arg1: memref<64x25xbf16, #tpu.memory_space<vmem>>, %arg2: memref<25x4xbf16, #tpu.memory_space<vmem>>, %arg3: memref<8x32xbf16, #tpu.memory_space<vmem>>, %arg4: memref<32x32xbf16, #tpu.memory_space<vmem>>, %arg5: memref<4x32xbf16, #tpu.memory_space<vmem>>, %arg6: memref<1x32xf32, #tpu.memory_space<vmem>>, %arg7: memref<32x16xbf16, #tpu.memory_space<vmem>>, %arg8: memref<1x16xf32, #tpu.memory_space<vmem>>, %arg9: memref<16x128xbf16, #tpu.memory_space<vmem>>, %arg10: memref<1x128xf32, #tpu.memory_space<vmem>>, %arg11: memref<8x128xf32, #tpu.memory_space<vmem>>) attributes {dimension_semantics = [#tpu.dimension_semantics<parallel>], iteration_bounds = array<i64: 1>, scalar_prefetch = 0 : i64, scratch_operands = 0 : i64, tpu.core_type = #tpu.core_type<tc>, window_params = [{transform_indices = @transform_0, window_bounds = array<i64: 64, 25>}, {pipeline_mode = #tpu.pipeline_mode<synchronous>, transform_indices = @transform_1, window_bounds = array<i64: 25, 4>}, {transform_indices = @transform_2, window_bounds = array<i64: 8, 32>}, {pipeline_mode = #tpu.pipeline_mode<synchronous>, transform_indices = @transform_3, window_bounds = array<i64: 32, 32>}, {pipeline_mode = #tpu.pipeline_mode<synchronous>, transform_indices = @transform_4, window_bounds = array<i64: 4, 32>}, {pipeline_mode = #tpu.pipeline_mode<synchronous>, transform_indices = @transform_5, window_bounds = array<i64: 1, 32>}, {pipeline_mode = #tpu.pipeline_mode<synchronous>, transform_indices = @transform_6, window_bounds = array<i64: 32, 16>}, {pipeline_mode = #tpu.pipeline_mode<synchronous>, transform_indices = @transform_7, window_bounds = array<i64: 1, 16>}, {pipeline_mode = #tpu.pipeline_mode<synchronous>, transform_indices = @transform_8, window_bounds = array<i64: 16, 128>}, {pipeline_mode = #tpu.pipeline_mode<synchronous>, transform_indices = @transform_9, window_bounds = array<i64: 1, 128>}, {transform_indices = @transform_10, window_bounds = array<i64: 8, 128>}]} {
    %c0 = arith.constant 0 : index
    %c0_0 = arith.constant 0 : index
    %0 = vector.load %arg1[%c0, %c0_0] : memref<64x25xbf16, #tpu.memory_space<vmem>>, vector<64x25xbf16>
    %c0_1 = arith.constant 0 : index
    %c0_2 = arith.constant 0 : index
    %1 = vector.load %arg2[%c0_1, %c0_2] : memref<25x4xbf16, #tpu.memory_space<vmem>>, vector<25x4xbf16>
    %cst = arith.constant dense<0.000000e+00> : vector<64x4xf32>
    %2 = tpu.matmul %0, %1, %cst {dimension_numbers = #tpu.dot_dimension_numbers<[1], [0], [0], [1], [0, 0, 1, 1], [], []>} : vector<64x25xbf16>, vector<25x4xbf16>, vector<64x4xf32> -> vector<64x4xf32>
    %cst_3 = arith.constant 0.000000e+00 : f32
    %3 = vector.broadcast %cst_3 : f32 to vector<64x4xf32>
    %4 = arith.maximumf %2, %3 : vector<64x4xf32>
    %5 = vector.shape_cast %4 : vector<64x4xf32> to vector<8x8x4xf32>
    %cst_4 = arith.constant dense<0.000000e+00> : vector<8x4xf32>
    %6 = vector.multi_reduction <add>, %5, %cst_4 [1] : vector<8x8x4xf32> to vector<8x4xf32>
    %c0_5 = arith.constant 0 : index
    %c0_6 = arith.constant 0 : index
    %7 = vector.load %arg3[%c0_5, %c0_6] : memref<8x32xbf16, #tpu.memory_space<vmem>>, vector<8x32xbf16>
    %c0_7 = arith.constant 0 : index
    %c0_8 = arith.constant 0 : index
    %8 = vector.load %arg4[%c0_7, %c0_8] : memref<32x32xbf16, #tpu.memory_space<vmem>>, vector<32x32xbf16>
    %cst_9 = arith.constant dense<0.000000e+00> : vector<8x32xf32>
    %9 = tpu.matmul %7, %8, %cst_9 {dimension_numbers = #tpu.dot_dimension_numbers<[1], [0], [0], [1], [0, 0, 1, 1], [], []>} : vector<8x32xbf16>, vector<32x32xbf16>, vector<8x32xf32> -> vector<8x32xf32>
    %10 = arith.truncf %6 : vector<8x4xf32> to vector<8x4xbf16>
    %c0_10 = arith.constant 0 : index
    %c0_11 = arith.constant 0 : index
    %11 = vector.load %arg5[%c0_10, %c0_11] : memref<4x32xbf16, #tpu.memory_space<vmem>>, vector<4x32xbf16>
    %cst_12 = arith.constant dense<0.000000e+00> : vector<8x32xf32>
    %12 = tpu.matmul %10, %11, %cst_12 {dimension_numbers = #tpu.dot_dimension_numbers<[1], [0], [0], [1], [0, 0, 1, 1], [], []>} : vector<8x4xbf16>, vector<4x32xbf16>, vector<8x32xf32> -> vector<8x32xf32>
    %13 = arith.addf %9, %12 : vector<8x32xf32>
    %c0_13 = arith.constant 0 : index
    %c0_14 = arith.constant 0 : index
    %14 = vector.load %arg6[%c0_13, %c0_14] : memref<1x32xf32, #tpu.memory_space<vmem>>, vector<1x32xf32>
    %15 = vector.broadcast %14 : vector<1x32xf32> to vector<8x32xf32>
    %16 = arith.addf %13, %15 : vector<8x32xf32>
    %17 = arith.negf %16 : vector<8x32xf32>
    %18 = math.exp %17 : vector<8x32xf32>
    %cst_15 = arith.constant 1.000000e+00 : f32
    %19 = vector.broadcast %cst_15 : f32 to vector<8x32xf32>
    %20 = arith.addf %19, %18 : vector<8x32xf32>
    %21 = arith.divf %19, %20 : vector<8x32xf32>
    %22 = arith.mulf %16, %21 : vector<8x32xf32>
    %23 = arith.truncf %22 : vector<8x32xf32> to vector<8x32xbf16>
    %c0_16 = arith.constant 0 : index
    %c0_17 = arith.constant 0 : index
    %24 = vector.load %arg7[%c0_16, %c0_17] : memref<32x16xbf16, #tpu.memory_space<vmem>>, vector<32x16xbf16>
    %cst_18 = arith.constant dense<0.000000e+00> : vector<8x16xf32>
    %25 = tpu.matmul %23, %24, %cst_18 {dimension_numbers = #tpu.dot_dimension_numbers<[1], [0], [0], [1], [0, 0, 1, 1], [], []>} : vector<8x32xbf16>, vector<32x16xbf16>, vector<8x16xf32> -> vector<8x16xf32>
    %c0_19 = arith.constant 0 : index
    %c0_20 = arith.constant 0 : index
    %26 = vector.load %arg8[%c0_19, %c0_20] : memref<1x16xf32, #tpu.memory_space<vmem>>, vector<1x16xf32>
    %27 = vector.broadcast %26 : vector<1x16xf32> to vector<8x16xf32>
    %28 = arith.addf %25, %27 : vector<8x16xf32>
    %29 = arith.negf %28 : vector<8x16xf32>
    %30 = math.exp %29 : vector<8x16xf32>
    %cst_21 = arith.constant 1.000000e+00 : f32
    %31 = vector.broadcast %cst_21 : f32 to vector<8x16xf32>
    %32 = arith.addf %31, %30 : vector<8x16xf32>
    %33 = arith.divf %31, %32 : vector<8x16xf32>
    %34 = arith.mulf %28, %33 : vector<8x16xf32>
    %35 = arith.truncf %34 : vector<8x16xf32> to vector<8x16xbf16>
    %c0_22 = arith.constant 0 : index
    %c0_23 = arith.constant 0 : index
    %36 = vector.load %arg9[%c0_22, %c0_23] : memref<16x128xbf16, #tpu.memory_space<vmem>>, vector<16x128xbf16>
    %cst_24 = arith.constant dense<0.000000e+00> : vector<8x128xf32>
    %37 = tpu.matmul %35, %36, %cst_24 {dimension_numbers = #tpu.dot_dimension_numbers<[1], [0], [0], [1], [0, 0, 1, 1], [], []>} : vector<8x16xbf16>, vector<16x128xbf16>, vector<8x128xf32> -> vector<8x128xf32>
    %c0_25 = arith.constant 0 : index
    %c0_26 = arith.constant 0 : index
    %38 = vector.load %arg10[%c0_25, %c0_26] : memref<1x128xf32, #tpu.memory_space<vmem>>, vector<1x128xf32>
    %39 = vector.broadcast %38 : vector<1x128xf32> to vector<8x128xf32>
    %40 = arith.addf %37, %39 : vector<8x128xf32>
    %cst_27 = arith.constant dense<0xFF800000> : vector<8xf32>
    %41 = vector.multi_reduction <maximumf>, %40, %cst_27 [1] : vector<8x128xf32> to vector<8xf32>
    %42 = vector.shape_cast %41 : vector<8xf32> to vector<8x1xf32>
    %43 = vector.broadcast %42 : vector<8x1xf32> to vector<8x128xf32>
    %44 = arith.subf %40, %43 : vector<8x128xf32>
    %45 = math.exp %44 : vector<8x128xf32>
    %cst_28 = arith.constant dense<0.000000e+00> : vector<8xf32>
    %46 = vector.multi_reduction <add>, %45, %cst_28 [1] : vector<8x128xf32> to vector<8xf32>
    %47 = vector.shape_cast %46 : vector<8xf32> to vector<8x1xf32>
    %48 = tpu.reciprocal %47 {approx = true} : vector<8x1xf32> -> vector<8x1xf32>
    %49 = vector.broadcast %48 : vector<8x1xf32> to vector<8x128xf32>
    %50 = arith.mulf %45, %49 : vector<8x128xf32>
    %c0_29 = arith.constant 0 : index
    %c0_30 = arith.constant 0 : index
    %51 = vector.load %arg11[%c0_29, %c0_30] : memref<8x128xf32, #tpu.memory_space<vmem>>, vector<8x128xf32>
    tpu.vector_store %arg11[%c0_29, %c0_30], %50 {strides = array<i32>} : memref<8x128xf32, #tpu.memory_space<vmem>>, vector<8x128xf32>,
    return
  }
  func.func @transform_0(%arg0: i32) -> (i32, i32) {
    %c0_i32 = arith.constant 0 : i32
    %c0_i32_0 = arith.constant 0 : i32
    return %arg0, %c0_i32 : i32, i32
  }
  func.func @transform_1(%arg0: i32) -> (i32, i32) {
    %c0_i32 = arith.constant 0 : i32
    %c0_i32_0 = arith.constant 0 : i32
    %c0_i32_1 = arith.constant 0 : i32
    return %c0_i32, %c0_i32_0 : i32, i32
  }
  func.func @transform_2(%arg0: i32) -> (i32, i32) {
    %c0_i32 = arith.constant 0 : i32
    %c0_i32_0 = arith.constant 0 : i32
    return %arg0, %c0_i32 : i32, i32
  }
  func.func @transform_3(%arg0: i32) -> (i32, i32) {
    %c0_i32 = arith.constant 0 : i32
    %c0_i32_0 = arith.constant 0 : i32
    %c0_i32_1 = arith.constant 0 : i32
    return %c0_i32, %c0_i32_0 : i32, i32
  }
  func.func @transform_4(%arg0: i32) -> (i32, i32) {
    %c0_i32 = arith.constant 0 : i32
    %c0_i32_0 = arith.constant 0 : i32
    %c0_i32_1 = arith.constant 0 : i32
    return %c0_i32, %c0_i32_0 : i32, i32
  }
  func.func @transform_5(%arg0: i32) -> (i32, i32) {
    %c0_i32 = arith.constant 0 : i32
    %c0_i32_0 = arith.constant 0 : i32
    %c0_i32_1 = arith.constant 0 : i32
    return %c0_i32, %c0_i32_0 : i32, i32
  }
  func.func @transform_6(%arg0: i32) -> (i32, i32) {
    %c0_i32 = arith.constant 0 : i32
    %c0_i32_0 = arith.constant 0 : i32
    %c0_i32_1 = arith.constant 0 : i32
    return %c0_i32, %c0_i32_0 : i32, i32
  }
  func.func @transform_7(%arg0: i32) -> (i32, i32) {
    %c0_i32 = arith.constant 0 : i32
    %c0_i32_0 = arith.constant 0 : i32
    %c0_i32_1 = arith.constant 0 : i32
    return %c0_i32, %c0_i32_0 : i32, i32
  }
  func.func @transform_8(%arg0: i32) -> (i32, i32) {
    %c0_i32 = arith.constant 0 : i32
    %c0_i32_0 = arith.constant 0 : i32
    %c0_i32_1 = arith.constant 0 : i32
    return %c0_i32, %c0_i32_0 : i32, i32
  }
  func.func @transform_9(%arg0: i32) -> (i32, i32) {
    %c0_i32 = arith.constant 0 : i32
    %c0_i32_0 = arith.constant 0 : i32
    %c0_i32_1 = arith.constant 0 : i32
    return %c0_i32, %c0_i32_0 : i32, i32
  }
  func.func @transform_10(%arg0: i32) -> (i32, i32) {
    %c0_i32 = arith.constant 0 : i32
    %c0_i32_0 = arith.constant 0 : i32
    return %arg0, %c0_i32 : i32, i32
  }
}

</mosaic_0001>

<llo_original>
// kernel: tpu_custom_call.1
$region0: #{tpu_custom_call.1}
  #allocation0 [shape = 'u32[]', space=smem, size = 0x4, offset = 0x4, fixed_abs, tag = 'smem constant byte address 0x4 - core index']
  #allocation1 [shape = 'u32[144,128]{1,0:T(1,128)}', space=vmem, size = 0x12000, scoped, tag = 'internal scratch']
  %s0 = inlined_call_operand.vmem [shape: bf16[64,25], index: 0, kind: input, shape index: {}]
  %s1 = inlined_call_operand.vmem [shape: bf16[25,4], index: 1, kind: input, shape index: {}]
  %s2 = inlined_call_operand.vmem [shape: bf16[8,32], index: 2, kind: input, shape index: {}]
  %s3 = inlined_call_operand.vmem [shape: bf16[32,32], index: 3, kind: input, shape index: {}]
  %s4 = inlined_call_operand.vmem [shape: bf16[4,32], index: 4, kind: input, shape index: {}]
  %s5 = inlined_call_operand.vmem [shape: f32[1,32], index: 5, kind: input, shape index: {}]
  %s6 = inlined_call_operand.vmem [shape: bf16[32,16], index: 6, kind: input, shape index: {}]
  %s7 = inlined_call_operand.vmem [shape: f32[1,16], index: 7, kind: input, shape index: {}]
  %s8 = inlined_call_operand.vmem [shape: bf16[16,128], index: 8, kind: input, shape index: {}]
  %s9 = inlined_call_operand.vmem [shape: f32[1,128], index: 9, kind: input, shape index: {}]
  %s10 = inlined_call_operand.hbm [shape: f32[8,128], index: 10, kind: output, shape index: {}]
  %s11 = sld [smem:[#allocation0]]
  $region50: #{tpu_custom_call.1} parent=0
    _
  %s13 = ssub.s32 1, %s11
  %s14 = scalar_select 0, %s13, %s11
  $region1: #{tpu_custom_call.1} parent=0
    #allocation2 [shape = 'u8[4096]{0}', space=vmem, size = 0x1000, scoped, tag = 'output window, operand 0, single buffered']
    #allocation3 [shape = 's32[1]{0}', space=sflag, size = 0x4, scoped, tag = 'scoped memory for tpu_custom_call.1']
    %15 = vsyncpa [#allocation3], 0
    // Predicated region
    $region2: #{tpu_custom_call.1} parent=1 // pred_check
      _
    $region3: #{tpu_custom_call.1} parent=1 // pred_check_branch
      %17 = sbr.rel (0) target = $region5
    $region4: #{tpu_custom_call.1} parent=1 // pred_region
      _
    $region5: #{tpu_custom_call.1} parent=1 // pred_fallthru
      _
    // Predicated region
    $region6: #{tpu_custom_call.1} parent=1 // pred_check
      _
    $region7: #{tpu_custom_call.1} parent=1 // pred_check_branch
      %19 = sbr.rel (0) target = $region9
    $region8: #{tpu_custom_call.1} parent=1 // pred_region
      _
    $region9: #{tpu_custom_call.1} parent=1 // pred_fallthru
      _
    // Predicated region
    $region10: #{tpu_custom_call.1} parent=1 // pred_check
      _
    $region11: #{tpu_custom_call.1} parent=1 // pred_check_branch
      %21 = sbr.rel (0) target = $region13
    $region12: #{tpu_custom_call.1} parent=1 // pred_region
      _
    $region13: #{tpu_custom_call.1} parent=1 // pred_fallthru
      _
    // Predicated region
    $region14: #{tpu_custom_call.1} parent=1 // pred_check
      _
    $region15: #{tpu_custom_call.1} parent=1 // pred_check_branch
      %23 = sbr.rel (0) target = $region17
    $region16: #{tpu_custom_call.1} parent=1 // pred_region
      _
    $region17: #{tpu_custom_call.1} parent=1 // pred_fallthru
      _
    // Predicated region
    $region18: #{tpu_custom_call.1} parent=1 // pred_check
      _
    $region19: #{tpu_custom_call.1} parent=1 // pred_check_branch
      %25 = sbr.rel (0) target = $region21
    $region20: #{tpu_custom_call.1} parent=1 // pred_region
      _
    $region21: #{tpu_custom_call.1} parent=1 // pred_fallthru
      _
    // Predicated region
    $region22: #{tpu_custom_call.1} parent=1 // pred_check
      _
    $region23: #{tpu_custom_call.1} parent=1 // pred_check_branch
      %27 = sbr.rel (0) target = $region25
    $region24: #{tpu_custom_call.1} parent=1 // pred_region
      _
    $region25: #{tpu_custom_call.1} parent=1 // pred_fallthru
      _
    // Predicated region
    $region26: #{tpu_custom_call.1} parent=1 // pred_check
      _
    $region27: #{tpu_custom_call.1} parent=1 // pred_check_branch
      %29 = sbr.rel (0) target = $region29
    $region28: #{tpu_custom_call.1} parent=1 // pred_region
      _
    $region29: #{tpu_custom_call.1} parent=1 // pred_fallthru
      _
    // Predicated region
    $region30: #{tpu_custom_call.1} parent=1 // pred_check
      _
    $region31: #{tpu_custom_call.1} parent=1 // pred_check_branch
      %31 = sbr.rel (0) target = $region33
    $region32: #{tpu_custom_call.1} parent=1 // pred_region
      _
    $region33: #{tpu_custom_call.1} parent=1 // pred_fallthru
      _
    // Predicated region
    $region34: #{tpu_custom_call.1} parent=1 // pred_check
      _
    $region35: #{tpu_custom_call.1} parent=1 // pred_check_branch
      %33 = sbr.rel (0) target = $region37
    $region36: #{tpu_custom_call.1} parent=1 // pred_region
      _
    $region37: #{tpu_custom_call.1} parent=1 // pred_fallthru
      _
    // Predicated region
    $region38: #{tpu_custom_call.1} parent=1 // pred_check
      _
    $region39: #{tpu_custom_call.1} parent=1 // pred_check_branch
      %35 = sbr.rel (0) target = $region41
    $region40: #{tpu_custom_call.1} parent=1 // pred_region
      _
    $region41: #{tpu_custom_call.1} parent=1 // pred_fallthru
      _
    %v37 = vld [vmem:[%s0] sm:$0xf]
    %v38 = vld [vmem:[%s0 + $0x4] sm:$0xf]
    %v39 = vld [vmem:[%s0 + $0x8] sm:$0xf]
    %v40 = vld [vmem:[%s0 + $0xc] sm:$0xf]
    %v41 = vld [vmem:[%s0 + $0x10] sm:$0xf]
    %v42 = vld [vmem:[%s0 + $0x14] sm:$0xf]
    %v43 = vld [vmem:[%s0 + $0x18] sm:$0xf]
    %v44 = vld [vmem:[%s0 + $0x1c] sm:$0xf]
    %v45 = vld [vmem:[%s1] sm:$0xf]
    %v46 = vld [vmem:[%s1 + $0x4] sm:$0xf]
    %v47 = vld [vmem:[%s1 + $0x8] sm:$0xf]
    %v48 = vld [vmem:[%s1 + $0xc] sm:$0x1]
    %v57 = vunpack.c.l.b16 %v37
    %v58 = vunpack.c.l.b16 %v38
    %v59 = vunpack.c.l.b16 %v39
    %v60 = vunpack.c.l.b16 %v40
    %v61 = vunpack.c.l.b16 %v41
    %v62 = vunpack.c.l.b16 %v42
    %v63 = vunpack.c.l.b16 %v43
    %v64 = vunpack.c.l.b16 %v44
    %v65 = vpack.c.b16 %v58, %v57
    %v66 = vpack.c.b16 %v60, %v59
    %v67 = vpack.c.b16 %v62, %v61
    %v68 = vpack.c.b16 %v64, %v63
    %v73 = vunpack.c.l.b16 %v45
    %v74 = vunpack.c.l.b16 %v46
    %v75 = vunpack.c.l.b16 %v47
    %v76 = vunpack.c.l.b16 %v48
    %v77 = vpack.c.b16 %v74, %v73
    %v78 = vpack.c.b16 %v76, %v75
    %vm80 = vcmask 203776
    %v82 = vsel %vm80, %v65, 0
    %v85 = vsel %vm80, %v66, 0
    %v88 = vsel %vm80, %v67, 0
    %v91 = vsel %vm80, %v68, 0
    %vm93 = vcmask 1043456
    %vm94 = vcmask 1044480
    %v95 = vsel %vm93, 4294967295, 65535
    %v96 = vsel %vm94, %v95, 0
    %v98 = vand.u32 %v78, %v96
    %100 = vmatprep.subr.bf16.mxu0 0
    %101 = vmatpush1.bf16.msra.mxu0 %v77
    %102 = vmatprep.subr.bf16.mxu0 0
    %103 = vmatpush1.bf16.msra.mxu0 %v98
    %104 = vmatprep.subr.bf16.mxu0 0
    %105 = vmatpush1.bf16.msra.mxu0 0
    %106 = vmatprep.subr.bf16.mxu0 0
    %107 = vmatpush1.bf16.msra.mxu0 0
    %108 = vmatprep.subr.bf16.mxu0 0
    %109 = vmatpush1.bf16.msra.mxu0 0
    %110 = vmatprep.subr.bf16.mxu0 0
    %111 = vmatpush1.bf16.msra.mxu0 0
    %112 = vmatprep.subr.bf16.mxu0 0
    %113 = vmatpush1.bf16.msra.mxu0 0
    %114 = vmatprep.subr.bf16.mxu0 0
    %115 = vmatpush1.bf16.msra.mxu0 0
    %116 = vmatprep.subr.bf16.mxu0 0
    %117 = vmatpush1.bf16.msra.mxu0 0
    %118 = vmatprep.subr.bf16.mxu0 0
    %119 = vmatpush1.bf16.msra.mxu0 0
    %120 = vmatprep.subr.bf16.mxu0 0
    %121 = vmatpush1.bf16.msra.mxu0 0
    %122 = vmatprep.subr.bf16.mxu0 0
    %123 = vmatpush1.bf16.msra.mxu0 0
    %124 = vmatprep.subr.bf16.mxu0 0
    %125 = vmatpush1.bf16.msra.mxu0 0
    %126 = vmatprep.subr.bf16.mxu0 0
    %127 = vmatpush1.bf16.msra.mxu0 0
    %128 = vmatprep.subr.bf16.mxu0 0
    %129 = vmatpush1.bf16.msra.mxu0 0
    %130 = vmatprep.subr.bf16.mxu0 0
    %131 = vmatpush1.bf16.msra.mxu0 0
    %132 = vmatprep.mubr.bf16.mxu0 0
    %133 = vmatmul.mubr.bf16.gmra.mrb[0].mxu0 %v82
    %v134 = vpop.f32.mrb[0].mxu0
    %v135 = vadd.f32 0.0, %v134
    %v136 = vpop.f32.mrb[0].mxu0
    %v137 = vpop.f32.mrb[0].mxu0
    %v138 = vadd.f32 0.0, %v137
    %v139 = vpop.f32.mrb[0].mxu0
    %140 = vmatprep.mubr.bf16.mxu0 0
    %141 = vmatmul.mubr.bf16.gmra.mrb[0].mxu0 %v85
    %v142 = vpop.f32.mrb[0].mxu0
    %v143 = vadd.f32 0.0, %v142
    %v144 = vpop.f32.mrb[0].mxu0
    %v145 = vpop.f32.mrb[0].mxu0
    %v146 = vadd.f32 0.0, %v145
    %v147 = vpop.f32.mrb[0].mxu0
    %148 = vmatprep.mubr.bf16.mxu0 0
    %149 = vmatmul.mubr.bf16.gmra.mrb[0].mxu0 %v88
    %v150 = vpop.f32.mrb[0].mxu0
    %v151 = vadd.f32 0.0, %v150
    %v152 = vpop.f32.mrb[0].mxu0
    %v153 = vpop.f32.mrb[0].mxu0
    %v154 = vadd.f32 0.0, %v153
    %v155 = vpop.f32.mrb[0].mxu0
    %156 = vmatprep.mubr.bf16.mxu0 0
    %157 = vmatmul.mubr.bf16.gmra.mrb[0].mxu0 %v91
    %v158 = vpop.f32.mrb[0].mxu0
    %v159 = vadd.f32 0.0, %v158
    %v160 = vpop.f32.mrb[0].mxu0
    %v161 = vpop.f32.mrb[0].mxu0
    %v162 = vadd.f32 0.0, %v161
    %v163 = vpop.f32.mrb[0].mxu0
    %164 = vdwg.mxu0
    %v165 = vmax.f32 %v135, 0.0
    %v166 = vmax.f32 %v138, 0.0
    %v167 = vmax.f32 %v143, 0.0
    %v168 = vmax.f32 %v146, 0.0
    %v169 = vmax.f32 %v151, 0.0
    %v170 = vmax.f32 %v154, 0.0
    %v171 = vmax.f32 %v159, 0.0
    %v172 = vmax.f32 %v162, 0.0
    %vm173 = vcmask 31744
    %v174 = vsel %vm173, %v165, 0.0
    %v175 = vrot.slane %v174, 4
    %v176 = vadd.f32 %v174, %v175
    %v177 = vrot.slane %v176, 2
    %v178 = vadd.f32 %v176, %v177
    %v179 = vrot.slane %v178, 1
    %v180 = vadd.f32 %v178, %v179
    %v181 = vsel %vm173, %v166, 0.0
    %v182 = vrot.slane %v181, 4
    %v183 = vadd.f32 %v181, %v182
    %v184 = vrot.slane %v183, 2
    %v185 = vadd.f32 %v183, %v184
    %v186 = vrot.slane %v185, 1
    %v187 = vadd.f32 %v185, %v186
    %v188 = vsel %vm173, %v167, 0.0
    %v189 = vrot.slane %v188, 4
    %v190 = vadd.f32 %v188, %v189
    %v191 = vrot.slane %v190, 2
    %v192 = vadd.f32 %v190, %v191
    %v193 = vrot.slane %v192, 1
    %v194 = vadd.f32 %v192, %v193
    %v195 = vsel %vm173, %v168, 0.0
    %v196 = vrot.slane %v195, 4
    %v197 = vadd.f32 %v195, %v196
    %v198 = vrot.slane %v197, 2
    %v199 = vadd.f32 %v197, %v198
    %v200 = vrot.slane %v199, 1
    %v201 = vadd.f32 %v199, %v200
    %v202 = vsel %vm173, %v169, 0.0
    %v203 = vrot.slane %v202, 4
    %v204 = vadd.f32 %v202, %v203
    %v205 = vrot.slane %v204, 2
    %v206 = vadd.f32 %v204, %v205
    %v207 = vrot.slane %v206, 1
    %v208 = vadd.f32 %v206, %v207
    %v209 = vsel %vm173, %v170, 0.0
    %v210 = vrot.slane %v209, 4
    %v211 = vadd.f32 %v209, %v210
    %v212 = vrot.slane %v211, 2
    %v213 = vadd.f32 %v211, %v212
    %v214 = vrot.slane %v213, 1
    %v215 = vadd.f32 %v213, %v214
    %v216 = vsel %vm173, %v171, 0.0
    %v217 = vrot.slane %v216, 4
    %v218 = vadd.f32 %v216, %v217
    %v219 = vrot.slane %v218, 2
    %v220 = vadd.f32 %v218, %v219
    %v221 = vrot.slane %v220, 1
    %v222 = vadd.f32 %v220, %v221
    %v223 = vsel %vm173, %v172, 0.0
    %v224 = vrot.slane %v223, 4
    %v225 = vadd.f32 %v223, %v224
    %v226 = vrot.slane %v225, 2
    %v227 = vadd.f32 %v225, %v226
    %v228 = vrot.slane %v227, 1
    %v229 = vadd.f32 %v227, %v228
    %v230 = vld [vmem:[%s2] sm:$0xf]
    %v231 = vld [vmem:[%s3] sm:$0xf]
    %v232 = vld [vmem:[%s3 + $0x4] sm:$0xf]
    %v233 = vld [vmem:[%s3 + $0x8] sm:$0xf]
    %v234 = vld [vmem:[%s3 + $0xc] sm:$0xf]
    %v235 = vpack.c.bf16 %v180, %v180
    %v236 = vpack.c.bf16 %v187, %v187
    %v237 = vpack.c.bf16 %v194, %v194
    %v238 = vpack.c.bf16 %v201, %v201
    %v239 = vpack.c.bf16 %v208, %v208
    %v240 = vpack.c.bf16 %v215, %v215
    %v241 = vpack.c.bf16 %v222, %v222
    %v242 = vpack.c.bf16 %v229, %v229
    %v243 = vld [vmem:[%s4] sm:$0x3]
    %v252 = vunpack.c.l.b16 %v235
    %v253 = vunpack.c.l.b16 %v236
    %v254 = vunpack.c.l.b16 %v237
    %v255 = vunpack.c.l.b16 %v238
    %v256 = vunpack.c.l.b16 %v239
    %v257 = vunpack.c.l.b16 %v240
    %v258 = vunpack.c.l.b16 %v241
    %v259 = vunpack.c.l.b16 %v242
    %vm260 = vcmask 1041409
    %v261 = vsel %vm260, %v253, %v252
    %vm262 = vcmask 1042434
    %v263 = vsel %vm262, %v254, %v261
    %vm264 = vcmask 1043459
    %v265 = vsel %vm264, %v255, %v263
    %vm266 = vcmask 1044484
    %v267 = vsel %vm266, %v256, %v265
    %vm268 = vcmask 1045509
    %v269 = vsel %vm268, %v257, %v267
    %vm270 = vcmask 1046534
    %v271 = vsel %vm270, %v258, %v269
    %vm272 = vcmask 1047559
    %v273 = vsel %vm272, %v259, %v271
    %v274 = vpack.c.b16 %v273, %v273
    %v276 = vsel %vm173, %v274, 0
    %vm278 = vcmask 1041408
    %v280 = vsel %vm278, %v243, 0
    %282 = vmatprep.subr.bf16.mxu0 0
    %283 = vmatpush1.bf16.msra.mxu0 %v280
    %284 = vmatprep.subr.bf16.mxu0 0
    %285 = vmatpush1.bf16.msra.mxu0 0
    %286 = vmatprep.subr.bf16.mxu0 0
    %287 = vmatpush1.bf16.msra.mxu0 0
    %288 = vmatprep.subr.bf16.mxu0 0
    %289 = vmatpush1.bf16.msra.mxu0 0
    %290 = vmatprep.subr.bf16.mxu0 0
    %291 = vmatpush1.bf16.msra.mxu0 0
    %292 = vmatprep.subr.bf16.mxu0 0
    %293 = vmatpush1.bf16.msra.mxu0 0
    %294 = vmatprep.subr.bf16.mxu0 0
    %295 = vmatpush1.bf16.msra.mxu0 0
    %296 = vmatprep.subr.bf16.mxu0 0
    %297 = vmatpush1.bf16.msra.mxu0 0
    %298 = vmatprep.subr.bf16.mxu0 0
    %299 = vmatpush1.bf16.msra.mxu0 0
    %300 = vmatprep.subr.bf16.mxu0 0
    %301 = vmatpush1.bf16.msra.mxu0 0
    %302 = vmatprep.subr.bf16.mxu0 0
    %303 = vmatpush1.bf16.msra.mxu0 0
    %304 = vmatprep.subr.bf16.mxu0 0
    %305 = vmatpush1.bf16.msra.mxu0 0
    %306 = vmatprep.subr.bf16.mxu0 0
    %307 = vmatpush1.bf16.msra.mxu0 0
    %308 = vmatprep.subr.bf16.mxu0 0
    %309 = vmatpush1.bf16.msra.mxu0 0
    %310 = vmatprep.subr.bf16.mxu0 0
    %311 = vmatpush1.bf16.msra.mxu0 0
    %312 = vmatprep.subr.bf16.mxu0 0
    %313 = vmatpush1.bf16.msra.mxu0 0
    %314 = vmatprep.mubr.bf16.mxu0 0
    %315 = vmatmul.mubr.bf16.gmra.mrb[0].mxu0 %v276
    %v316 = vpop.f32.mrb[0].mxu0
    %v317 = vadd.f32 0.0, %v316
    %v318 = vpop.f32.mrb[0].mxu0
    %v319 = vpop.f32.mrb[0].mxu0
    %v320 = vpop.f32.mrb[0].mxu0
    %321 = vdwg.mxu0
    %v326 = vunpack.c.l.b16 %v231
    %v327 = vunpack.c.l.b16 %v232
    %v328 = vunpack.c.l.b16 %v233
    %v329 = vunpack.c.l.b16 %v234
    %v330 = vpack.c.b16 %v327, %v326
    %v331 = vpack.c.b16 %v329, %v328
    %vm334 = vcmask 261120
    %v336 = vsel %vm334, %v230, 0
    %338 = vmatprep.subr.bf16.mxu0 0
    %339 = vmatpush1.bf16.msra.mxu0 %v330
    %340 = vmatprep.subr.bf16.mxu0 0
    %341 = vmatpush1.bf16.msra.mxu0 %v331
    %342 = vmatprep.subr.bf16.mxu0 0
    %343 = vmatpush1.bf16.msra.mxu0 0
    %344 = vmatprep.subr.bf16.mxu0 0
    %345 = vmatpush1.bf16.msra.mxu0 0
    %346 = vmatprep.subr.bf16.mxu0 0
    %347 = vmatpush1.bf16.msra.mxu0 0
    %348 = vmatprep.subr.bf16.mxu0 0
    %349 = vmatpush1.bf16.msra.mxu0 0
    %350 = vmatprep.subr.bf16.mxu0 0
    %351 = vmatpush1.bf16.msra.mxu0 0
    %352 = vmatprep.subr.bf16.mxu0 0
    %353 = vmatpush1.bf16.msra.mxu0 0
    %354 = vmatprep.subr.bf16.mxu0 0
    %355 = vmatpush1.bf16.msra.mxu0 0
    %356 = vmatprep.subr.bf16.mxu0 0
    %357 = vmatpush1.bf16.msra.mxu0 0
    %358 = vmatprep.subr.bf16.mxu0 0
    %359 = vmatpush1.bf16.msra.mxu0 0
    %360 = vmatprep.subr.bf16.mxu0 0
    %361 = vmatpush1.bf16.msra.mxu0 0
    %362 = vmatprep.subr.bf16.mxu0 0
    %363 = vmatpush1.bf16.msra.mxu0 0
    %364 = vmatprep.subr.bf16.mxu0 0
    %365 = vmatpush1.bf16.msra.mxu0 0
    %366 = vmatprep.subr.bf16.mxu0 0
    %367 = vmatpush1.bf16.msra.mxu0 0
    %368 = vmatprep.subr.bf16.mxu0 0
    %369 = vmatpush1.bf16.msra.mxu0 0
    %370 = vmatprep.mubr.bf16.mxu0 0
    %371 = vmatmul.mubr.bf16.gmra.mrb[0].mxu0 %v336
    %v372 = vpop.f32.mrb[0].mxu0
    %v373 = vadd.f32 %v317, %v372
    %v374 = vpop.f32.mrb[0].mxu0
    %v375 = vpop.f32.mrb[0].mxu0
    %v376 = vpop.f32.mrb[0].mxu0
    %377 = vdwg.mxu0
    %v378 = vld [vmem:[%s5] sm:$0x1]
    %v380 = vlaneseq
    %v381 = vshrl.u32 %v380, 7
    %v382 = vsub.s32 0, %v381
    %v383 = vrot.slane %v378, %v382
    %v385 = vadd.f32 %v373, %v383
    %v386 = vxor.u32 %v385, 2147483648
    %v387 = vmul.f32 %v386, 1.442695
    %v388 = vpow.pop %v387
    %v389 = vadd.f32 %v388, 1.0
    %v390 = vrcp.pop %v389
    %v391 = vmul.f32 1.0, %v390
    %v392 = vmul.f32 %v385, %v391
    %v393 = vpack.c.bf16 %v392, %v392
    %v394 = vld [vmem:[%s6] sm:$0xf]
    %v395 = vld [vmem:[%s6 + $0x4] sm:$0xf]
    %v396 = vld [vmem:[%s6 + $0x8] sm:$0xf]
    %v397 = vld [vmem:[%s6 + $0xc] sm:$0xf]
    %v398 = vld [vmem:[%s7] sm:$0x1]
    %v400 = vlaneseq
    %v401 = vshrl.u32 %v400, 7
    %v402 = vsub.s32 0, %v401
    %v403 = vrot.slane %v398, %v402
    %v409 = vunpack.c.l.b16 %v394
    %v410 = vunpack.c.l.b16 %v395
    %v411 = vunpack.c.l.b16 %v396
    %v412 = vunpack.c.l.b16 %v397
    %v413 = vpack.c.b16 %v410, %v409
    %v414 = vpack.c.b16 %v412, %v411
    %v418 = vsel %vm334, %v393, 0
    %420 = vmatprep.subr.bf16.mxu0 0
    %421 = vmatpush1.bf16.msra.mxu0 %v413
    %422 = vmatprep.subr.bf16.mxu0 0
    %423 = vmatpush1.bf16.msra.mxu0 %v414
    %424 = vmatprep.subr.bf16.mxu0 0
    %425 = vmatpush1.bf16.msra.mxu0 0
    %426 = vmatprep.subr.bf16.mxu0 0
    %427 = vmatpush1.bf16.msra.mxu0 0
    %428 = vmatprep.subr.bf16.mxu0 0
    %429 = vmatpush1.bf16.msra.mxu0 0
    %430 = vmatprep.subr.bf16.mxu0 0
    %431 = vmatpush1.bf16.msra.mxu0 0
    %432 = vmatprep.subr.bf16.mxu0 0
    %433 = vmatpush1.bf16.msra.mxu0 0
    %434 = vmatprep.subr.bf16.mxu0 0
    %435 = vmatpush1.bf16.msra.mxu0 0
    %436 = vmatprep.subr.bf16.mxu0 0
    %437 = vmatpush1.bf16.msra.mxu0 0
    %438 = vmatprep.subr.bf16.mxu0 0
    %439 = vmatpush1.bf16.msra.mxu0 0
    %440 = vmatprep.subr.bf16.mxu0 0
    %441 = vmatpush1.bf16.msra.mxu0 0
    %442 = vmatprep.subr.bf16.mxu0 0
    %443 = vmatpush1.bf16.msra.mxu0 0
    %444 = vmatprep.subr.bf16.mxu0 0
    %445 = vmatpush1.bf16.msra.mxu0 0
    %446 = vmatprep.subr.bf16.mxu0 0
    %447 = vmatpush1.bf16.msra.mxu0 0
    %448 = vmatprep.subr.bf16.mxu0 0
    %449 = vmatpush1.bf16.msra.mxu0 0
    %450 = vmatprep.subr.bf16.mxu0 0
    %451 = vmatpush1.bf16.msra.mxu0 0
    %452 = vmatprep.mubr.bf16.mxu0 0
    %453 = vmatmul.mubr.bf16.gmra.mrb[0].mxu0 %v418
    %v454 = vpop.f32.mrb[0].mxu0
    %v455 = vadd.f32 %v403, %v454
    %v456 = vpop.f32.mrb[0].mxu0
    %v457 = vpop.f32.mrb[0].mxu0
    %v458 = vpop.f32.mrb[0].mxu0
    %459 = vdwg.mxu0
    %v460 = vxor.u32 %v455, 2147483648
    %v461 = vmul.f32 %v460, 1.442695
    %v462 = vpow.pop %v461
    %v463 = vadd.f32 %v462, 1.0
    %v464 = vrcp.pop %v463
    %v465 = vmul.f32 1.0, %v464
    %v466 = vmul.f32 %v455, %v465
    %v467 = vpack.c.bf16 %v466, %v466
    %v468 = vld [vmem:[%s8] sm:$0xf]
    %v469 = vld [vmem:[%s8 + $0x4] sm:$0xf]
    %v470 = vld [vmem:[%s9] sm:$0x1]
    %v472 = vlaneseq
    %v473 = vshrl.u32 %v472, 7
    %v474 = vsub.s32 0, %v473
    %v475 = vrot.slane %v470, %v474
    %v479 = vunpack.c.l.b16 %v468
    %v480 = vunpack.c.l.b16 %v469
    %v481 = vpack.c.b16 %v480, %v479
    %vm483 = vcmask 130048
    %v485 = vsel %vm483, %v467, 0
    %487 = vmatprep.subr.bf16.mxu0 0
    %488 = vmatpush1.bf16.msra.mxu0 %v481
    %489 = vmatprep.subr.bf16.mxu0 0
    %490 = vmatpush1.bf16.msra.mxu0 0
    %491 = vmatprep.subr.bf16.mxu0 0
    %492 = vmatpush1.bf16.msra.mxu0 0
    %493 = vmatprep.subr.bf16.mxu0 0
    %494 = vmatpush1.bf16.msra.mxu0 0
    %495 = vmatprep.subr.bf16.mxu0 0
    %496 = vmatpush1.bf16.msra.mxu0 0
    %497 = vmatprep.subr.bf16.mxu0 0
    %498 = vmatpush1.bf16.msra.mxu0 0
    %499 = vmatprep.subr.bf16.mxu0 0
    %500 = vmatpush1.bf16.msra.mxu0 0
    %501 = vmatprep.subr.bf16.mxu0 0
    %502 = vmatpush1.bf16.msra.mxu0 0
    %503 = vmatprep.subr.bf16.mxu0 0
    %504 = vmatpush1.bf16.msra.mxu0 0
    %505 = vmatprep.subr.bf16.mxu0 0
    %506 = vmatpush1.bf16.msra.mxu0 0
    %507 = vmatprep.subr.bf16.mxu0 0
    %508 = vmatpush1.bf16.msra.mxu0 0
    %509 = vmatprep.subr.bf16.mxu0 0
    %510 = vmatpush1.bf16.msra.mxu0 0
    %511 = vmatprep.subr.bf16.mxu0 0
    %512 = vmatpush1.bf16.msra.mxu0 0
    %513 = vmatprep.subr.bf16.mxu0 0
    %514 = vmatpush1.bf16.msra.mxu0 0
    %515 = vmatprep.subr.bf16.mxu0 0
    %516 = vmatpush1.bf16.msra.mxu0 0
    %517 = vmatprep.subr.bf16.mxu0 0
    %518 = vmatpush1.bf16.msra.mxu0 0
    %519 = vmatprep.mubr.bf16.mxu0 0
    %520 = vmatmul.mubr.bf16.gmra.mrb[0].mxu0 %v485
    %v521 = vpop.f32.mrb[0].mxu0
    %v522 = vadd.f32 %v475, %v521
    %v523 = vpop.f32.mrb[0].mxu0
    %v524 = vpop.f32.mrb[0].mxu0
    %v525 = vpop.f32.mrb[0].mxu0
    %526 = vdwg.mxu0
    %527 = vmax.xlane.f32.xlu0 %v522
    %v528 = vpop.xlane.xlu0 %527
    %v529 = vsub.f32 %v522, %v528
    %v530 = vmul.f32 %v529, 1.442695
    %v531 = vpow.pop %v530
    %532 = vadd.xlane.f32.xlu0 %v531
    %v533 = vpop.xlane.xlu0 %532
    %v534 = vrcp.pop %v533
    %v535 = vmul.f32 %v531, %v534
    %536 = vst [vmem:[#allocation2] sm:$0xff] %v535
    // Predicated region
    $region42: #{tpu_custom_call.1} parent=1 // pred_check
      _
    $region43: #{tpu_custom_call.1} parent=1 // pred_check_branch
      %538 = sbr.rel (0) target = $region45
    $region44: #{tpu_custom_call.1} parent=1 // pred_region
      %s540 = ssub.s32 128, 128
      %541 = vsyncadd [#allocation3], %s540
      %s543 = sshll.u32 [#allocation2], 4
      %s544 = int_to_ptr.vmem [resolvable:$true] %s543
      %546 = dma.vmem_to_hbm [thread:$0]  %s544, 128, %s10, [#allocation3]
    $region45: #{tpu_custom_call.1} parent=1 // pred_fallthru
      _
    // Predicated region
    $region46: #{tpu_custom_call.1} parent=1 // pred_check
      _
    $region47: #{tpu_custom_call.1} parent=1 // pred_check_branch
      %548 = sbr.rel (0) target = $region49
    $region48: #{tpu_custom_call.1} parent=1 // pred_region
      %549 = dma.done [#allocation3], 128
    $region49: #{tpu_custom_call.1} parent=1 // pred_fallthru
      _
    %550 = vsyncpa [#allocation3], 1

</llo_original>
